<compile_context>
chip_gen: v6e
topology: v6e:2x2x1
jax: 0.10.0
libtpu: 0.0.40
codegen_flags: <defaults>
</compile_context>

<pallas_src>
import jax
import jax.numpy as jnp
from jax.experimental import pallas as pl
from jax.experimental.pallas import tpu as pltpu


# --------------------------------------------------------------------------- #
# Kernel
# --------------------------------------------------------------------------- #
def _encoder_kernel(xy_ref, w1_ref, b1_ref, w2_ref, b2_ref, w3_ref, b3_ref,
                    out_ref):
    """Fused 3-layer MLP on one [row_tile, in_dim] slab.

    All matmuls accumulate in f32 on the MXU; bias add + ReLU in f32 on the
    VPU; operands may be bf16 (wrapper casts) for ~3x fewer MXU passes.
    """
    h = jnp.dot(xy_ref[...], w1_ref[...], preferred_element_type=jnp.float32)
    h = jnp.maximum(h + b1_ref[...].astype(jnp.float32), 0.0)

    h = jnp.dot(h.astype(w2_ref.dtype), w2_ref[...],
                preferred_element_type=jnp.float32)
    h = jnp.maximum(h + b2_ref[...].astype(jnp.float32), 0.0)

    r = jnp.dot(h.astype(w3_ref.dtype), w3_ref[...],
                preferred_element_type=jnp.float32)
    r = r + b3_ref[...].astype(jnp.float32)
    out_ref[...] = r.astype(out_ref.dtype)


# --------------------------------------------------------------------------- #
# Tiling helpers
# --------------------------------------------------------------------------- #
def _sublane_align(itemsize):
    # f32 -> 8 rows/vreg, bf16 -> 16, int8/fp8 -> 32.
    return {4: 8, 2: 16, 1: 32}.get(int(itemsize), 8)


def _tpu_chip_info():
    """Best-effort (num_tensorcores, vmem_budget_bytes). Safe fallbacks."""
    num_cores = 1
    budget = 24 * 1024 * 1024
    try:
        dev = jax.devices()[0]
        kind = str(getattr(dev, "device_kind", "")).lower()
        if "v5" in kind and ("lite" in kind or "v5e" in kind):
            budget = 12 * 1024 * 1024          # v5e: 16 MiB scoped default
        num_cores = int(getattr(dev, "num_cores", 1) or 1)
    except Exception:
        pass
    try:
        info = pltpu.get_tpu_info()
        for attr in ("num_cores", "core_count", "num_tensorcores"):
            v = getattr(info, attr, None)
            if v:
                num_cores = max(num_cores, int(v))
                break
    except Exception:
        pass
    return num_cores, budget


def _choose_row_tile(rows, in_dim, hid_dim, r_dim, in_itemsize, out_itemsize,
                     align, num_cores, budget):
    """Largest aligned row tile whose streams fit `budget`, snapped to a
    divisor of `rows` when possible; capped for multi-TC load balance."""
    lane = lambda d: ((int(d) + 127) // 128) * 128

    # Per-row VMEM: double-buffered xy stream + double-buffered out stream +
    # a few f32 hidden/temp slabs.
    per_row = (2 * lane(in_dim) * in_itemsize
               + 2 * lane(r_dim) * out_itemsize
               + 3 * lane(hid_dim) * 4)
    # Grid-invariant (but double-buffered by the pipeline) weights + biases.
    fixed = 2 * ((in_dim * hid_dim + hid_dim * hid_dim + hid_dim * r_dim)
                 * in_itemsize
                 + (2 * hid_dim + r_dim) * 4)

    tile = max(align, (budget - fixed) // per_row)
    tile = min(tile, 8192)

    # Only multi-TC chips (v7x) benefit from forcing multiple grid steps;
    # single-TC v5e/v6e take the biggest tile that fits.
    if num_cores > 1:
        tile = min(tile, max(align, -(-rows // (2 * num_cores))))

    # Never exceed the (aligned) row count.
    tile = min(tile, max(align, -(-rows // align) * align))
    tile = max(align, (int(tile) // align) * align)

    # Prefer a tile that divides rows exactly -> no pad, no post-call slice.
    if rows % tile != 0:
        cand = tile
        while cand >= max(align, tile // 2):
            if rows % cand == 0:
                tile = cand
                break
            cand -= align

    est_bytes = fixed + per_row * tile
    return int(tile), int(est_bytes)


# --------------------------------------------------------------------------- #
# Wrapper
# --------------------------------------------------------------------------- #
def encoder_forward(x, y, params, *, compute_dtype=jnp.bfloat16,
                    out_dtype=None, row_tile=None):
    """x: [..., x_dim], y: [..., y_dim]  ->  r: [..., r_dim]

    compute_dtype: dtype of MXU operands (bf16 default; f32 for exact match).
    out_dtype:     output dtype (defaults to x.dtype).
    """
    w1, b1, w2, b2, w3, b3 = (params[k] for k in
                              ("w1", "b1", "w2", "b2", "w3", "b3"))
    x_dim, y_dim = x.shape[-1], y.shape[-1]
    in_dim = x_dim + y_dim
    assert w1.shape[0] == in_dim
    hid_dim = w1.shape[1]
    r_dim = w3.shape[1]
    out_dtype = x.dtype if out_dtype is None else out_dtype

    # Pack x/y into one stream; layer 1 becomes a single matmul.
    xy = jnp.concatenate([x, y], axis=-1)
    lead_shape = xy.shape[:-1]
    rows = 1
    for d in lead_shape:
        rows *= int(d)
    xy2d = xy.reshape(rows, in_dim).astype(compute_dtype)

    # MXU operands in compute_dtype; biases kept in f32 for the VPU adds.
    w1c = w1.astype(compute_dtype)
    w2c = w2.astype(compute_dtype)
    w3c = w3.astype(compute_dtype)
    b1f = jnp.asarray(b1, jnp.float32).reshape(1, hid_dim)
    b2f = jnp.asarray(b2, jnp.float32).reshape(1, hid_dim)
    b3f = jnp.asarray(b3, jnp.float32).reshape(1, r_dim)

    in_itemsize = jnp.dtype(compute_dtype).itemsize
    out_itemsize = jnp.dtype(out_dtype).itemsize
    align = max(_sublane_align(in_itemsize), _sublane_align(out_itemsize))

    num_cores, budget = _tpu_chip_info()
    if row_tile is None:
        row_tile, est_bytes = _choose_row_tile(
            rows, in_dim, hid_dim, r_dim, in_itemsize, out_itemsize,
            align, num_cores, budget)
    else:
        row_tile = max(align, (int(row_tile) // align) * align)
        est_bytes = budget

    # Fallback: pad rows to a tile multiple (rare once tile snaps to a divisor).
    padded_rows = pl.cdiv(rows, row_tile) * row_tile
    if padded_rows != rows:
        xy2d = jnp.pad(xy2d, ((0, padded_rows - rows), (0, 0)))

    grid = (padded_rows // row_tile,)
    const = lambda i: (0, 0)   # grid-invariant weight/bias blocks

    # Explicit scoped-VMEM limit: enough headroom for the chosen tile, but
    # always under v7x's 64 MiB physical VMEM.
    vmem_limit = int(min(48 * 1024 * 1024,
                         max(24 * 1024 * 1024, 2 * est_bytes)))

    out2d = pl.pallas_call(
        _encoder_kernel,
        out_shape=jax.ShapeDtypeStruct((padded_rows, r_dim), out_dtype),
        grid_spec=pltpu.PrefetchScalarGridSpec(
            num_scalar_prefetch=0,
            grid=grid,
            in_specs=[
                pl.BlockSpec((row_tile, in_dim), lambda i: (i, 0)),  # xy rows
                pl.BlockSpec((in_dim, hid_dim), const),              # w1
                pl.BlockSpec((1, hid_dim), const),                   # b1
                pl.BlockSpec((hid_dim, hid_dim), const),             # w2
                pl.BlockSpec((1, hid_dim), const),                   # b2
                pl.BlockSpec((hid_dim, r_dim), const),               # w3
                pl.BlockSpec((1, r_dim), const),                     # b3
            ],
            out_specs=pl.BlockSpec((row_tile, r_dim), lambda i: (i, 0)),
        ),
        compiler_params=pltpu.CompilerParams(
            dimension_semantics=("parallel",),
            vmem_limit_bytes=vmem_limit),
    )(xy2d, w1c, b1f, w2c, b2f, w3c, b3f)

    if padded_rows != rows:
        out2d = out2d[:rows]
    return out2d.reshape(*lead_shape, r_dim)


# --------------------------------------------------------------------------- #
# Params init + reference
# --------------------------------------------------------------------------- #
def init_encoder_params(key, x_dim, y_dim, r_dim=128, hid_dim=128,
                        dtype=jnp.float32):
    """Init matching nn.Linear's uniform(-1/sqrt(fan_in), 1/sqrt(fan_in)).
    Weights stored as (in_features, out_features)."""
    in_dim = x_dim + y_dim
    dims = [(in_dim, hid_dim), (hid_dim, hid_dim), (hid_dim, r_dim)]
    params = {}
    for li, (fi, fo) in enumerate(dims, start=1):
        key, kw, kb = jax.random.split(key, 3)
        bound = 1.0 / jnp.sqrt(jnp.asarray(fi, jnp.float32))
        params[f"w{li}"] = jax.random.uniform(
            kw, (fi, fo), dtype, minval=-bound, maxval=bound)
        params[f"b{li}"] = jax.random.uniform(
            kb, (1, fo), dtype, minval=-bound, maxval=bound)
    return params


def _reference_forward(x, y, params):
    xy = jnp.concatenate([x, y], axis=-1)
    h = jnp.maximum(xy @ params["w1"] + params["b1"], 0.0)
    h = jnp.maximum(h @ params["w2"] + params["b2"], 0.0)
    return h @ params["w3"] + params["b3"]


# --------------------------------------------------------------------------- #
# Self-test
# --------------------------------------------------------------------------- #
if __name__ == "__main__":
    # Small shapes consistent with the module (context set of points);
    # module defaults hid_dim = r_dim = 128.
    batch, num_points = 2, 8
    x_dim, y_dim = 4, 2
    hid_dim, r_dim = 128, 128

    key = jax.random.PRNGKey(0)
    kx, ky, kp = jax.random.split(key, 3)
    x = jax.random.normal(kx, (batch, num_points, x_dim), jnp.float32)
    y = jax.random.normal(ky, (batch, num_points, y_dim), jnp.float32)
    params = init_encoder_params(kp, x_dim, y_dim, r_dim=r_dim, hid_dim=hid_dim)

    r_ref = _reference_forward(x, y, params)

    # Exact f32 path (matches the PyTorch module numerics).
    r_f32 = jax.block_until_ready(
        encoder_forward(x, y, params, compute_dtype=jnp.float32))
    assert r_f32.shape == (batch, num_points, r_dim)
    assert jnp.allclose(r_f32, r_ref, atol=1e-4, rtol=1e-4), float(
        jnp.max(jnp.abs(r_f32 - r_ref)))

    # Default fast path: bf16 MXU operands, f32 accumulation.
    r_bf16 = jax.block_until_ready(encoder_forward(x, y, params))
    assert r_bf16.shape == (batch, num_points, r_dim)
    assert jnp.allclose(r_bf16, r_ref, atol=3e-2, rtol=3e-2), float(
        jnp.max(jnp.abs(r_bf16 - r_ref)))

    print("KERNEL_OK")
</pallas_src>

<mosaic_0001>
module attributes {stable_mosaic.version = 11 : i64} {
  func.func @_encoder_kernel(%arg0: i32, %arg1: memref<16x6xf32, #tpu.memory_space<vmem>>, %arg2: memref<6x128xf32, #tpu.memory_space<vmem>>, %arg3: memref<1x128xf32, #tpu.memory_space<vmem>>, %arg4: memref<128x128xf32, #tpu.memory_space<vmem>>, %arg5: memref<1x128xf32, #tpu.memory_space<vmem>>, %arg6: memref<128x128xf32, #tpu.memory_space<vmem>>, %arg7: memref<1x128xf32, #tpu.memory_space<vmem>>, %arg8: memref<16x128xf32, #tpu.memory_space<vmem>>) attributes {dimension_semantics = [#tpu.dimension_semantics<parallel>], iteration_bounds = array<i64: 1>, scalar_prefetch = 0 : i64, scratch_operands = 0 : i64, tpu.core_type = #tpu.core_type<tc>, window_params = [{transform_indices = @transform_0, window_bounds = array<i64: 16, 6>}, {pipeline_mode = #tpu.pipeline_mode<synchronous>, transform_indices = @transform_1, window_bounds = array<i64: 6, 128>}, {pipeline_mode = #tpu.pipeline_mode<synchronous>, transform_indices = @transform_2, window_bounds = array<i64: 1, 128>}, {pipeline_mode = #tpu.pipeline_mode<synchronous>, transform_indices = @transform_3, window_bounds = array<i64: 128, 128>}, {pipeline_mode = #tpu.pipeline_mode<synchronous>, transform_indices = @transform_4, window_bounds = array<i64: 1, 128>}, {pipeline_mode = #tpu.pipeline_mode<synchronous>, transform_indices = @transform_5, window_bounds = array<i64: 128, 128>}, {pipeline_mode = #tpu.pipeline_mode<synchronous>, transform_indices = @transform_6, window_bounds = array<i64: 1, 128>}, {transform_indices = @transform_7, window_bounds = array<i64: 16, 128>}]} {
    %c0 = arith.constant 0 : index
    %c0_0 = arith.constant 0 : index
    %0 = vector.load %arg1[%c0, %c0_0] : memref<16x6xf32, #tpu.memory_space<vmem>>, vector<16x6xf32>
    %c0_1 = arith.constant 0 : index
    %c0_2 = arith.constant 0 : index
    %1 = vector.load %arg2[%c0_1, %c0_2] : memref<6x128xf32, #tpu.memory_space<vmem>>, vector<6x128xf32>
    %cst = arith.constant dense<0.000000e+00> : vector<16x128xf32>
    %2 = tpu.matmul %0, %1, %cst {dimension_numbers = #tpu.dot_dimension_numbers<[1], [0], [0], [1], [0, 0, 1, 1], [], []>} : vector<16x6xf32>, vector<6x128xf32>, vector<16x128xf32> -> vector<16x128xf32>
    %c0_3 = arith.constant 0 : index
    %c0_4 = arith.constant 0 : index
    %3 = vector.load %arg3[%c0_3, %c0_4] : memref<1x128xf32, #tpu.memory_space<vmem>>, vector<1x128xf32>
    %4 = vector.broadcast %3 : vector<1x128xf32> to vector<16x128xf32>
    %5 = arith.addf %2, %4 : vector<16x128xf32>
    %cst_5 = arith.constant 0.000000e+00 : f32
    %6 = vector.broadcast %cst_5 : f32 to vector<16x128xf32>
    %7 = arith.maximumf %5, %6 : vector<16x128xf32>
    %c0_6 = arith.constant 0 : index
    %c0_7 = arith.constant 0 : index
    %8 = vector.load %arg4[%c0_6, %c0_7] : memref<128x128xf32, #tpu.memory_space<vmem>>, vector<128x128xf32>
    %cst_8 = arith.constant dense<0.000000e+00> : vector<16x128xf32>
    %9 = tpu.matmul %7, %8, %cst_8 {dimension_numbers = #tpu.dot_dimension_numbers<[1], [0], [0], [1], [0, 0, 1, 1], [], []>} : vector<16x128xf32>, vector<128x128xf32>, vector<16x128xf32> -> vector<16x128xf32>
    %c0_9 = arith.constant 0 : index
    %c0_10 = arith.constant 0 : index
    %10 = vector.load %arg5[%c0_9, %c0_10] : memref<1x128xf32, #tpu.memory_space<vmem>>, vector<1x128xf32>
    %11 = vector.broadcast %10 : vector<1x128xf32> to vector<16x128xf32>
    %12 = arith.addf %9, %11 : vector<16x128xf32>
    %cst_11 = arith.constant 0.000000e+00 : f32
    %13 = vector.broadcast %cst_11 : f32 to vector<16x128xf32>
    %14 = arith.maximumf %12, %13 : vector<16x128xf32>
    %c0_12 = arith.constant 0 : index
    %c0_13 = arith.constant 0 : index
    %15 = vector.load %arg6[%c0_12, %c0_13] : memref<128x128xf32, #tpu.memory_space<vmem>>, vector<128x128xf32>
    %cst_14 = arith.constant dense<0.000000e+00> : vector<16x128xf32>
    %16 = tpu.matmul %14, %15, %cst_14 {dimension_numbers = #tpu.dot_dimension_numbers<[1], [0], [0], [1], [0, 0, 1, 1], [], []>} : vector<16x128xf32>, vector<128x128xf32>, vector<16x128xf32> -> vector<16x128xf32>
    %c0_15 = arith.constant 0 : index
    %c0_16 = arith.constant 0 : index
    %17 = vector.load %arg7[%c0_15, %c0_16] : memref<1x128xf32, #tpu.memory_space<vmem>>, vector<1x128xf32>
    %18 = vector.broadcast %17 : vector<1x128xf32> to vector<16x128xf32>
    %19 = arith.addf %16, %18 : vector<16x128xf32>
    %c0_17 = arith.constant 0 : index
    %c0_18 = arith.constant 0 : index
    %20 = vector.load %arg8[%c0_17, %c0_18] : memref<16x128xf32, #tpu.memory_space<vmem>>, vector<16x128xf32>
    tpu.vector_store %arg8[%c0_17, %c0_18], %19 {strides = array<i32>} : memref<16x128xf32, #tpu.memory_space<vmem>>, vector<16x128xf32>,
    return
  }
  func.func @transform_0(%arg0: i32) -> (i32, i32) {
    %c0_i32 = arith.constant 0 : i32
    %c0_i32_0 = arith.constant 0 : i32
    return %arg0, %c0_i32 : i32, i32
  }
  func.func @transform_1(%arg0: i32) -> (i32, i32) {
    %c0_i32 = arith.constant 0 : i32
    %c0_i32_0 = arith.constant 0 : i32
    %c0_i32_1 = arith.constant 0 : i32
    return %c0_i32, %c0_i32_0 : i32, i32
  }
  func.func @transform_2(%arg0: i32) -> (i32, i32) {
    %c0_i32 = arith.constant 0 : i32
    %c0_i32_0 = arith.constant 0 : i32
    %c0_i32_1 = arith.constant 0 : i32
    return %c0_i32, %c0_i32_0 : i32, i32
  }
  func.func @transform_3(%arg0: i32) -> (i32, i32) {
    %c0_i32 = arith.constant 0 : i32
    %c0_i32_0 = arith.constant 0 : i32
    %c0_i32_1 = arith.constant 0 : i32
    return %c0_i32, %c0_i32_0 : i32, i32
  }
  func.func @transform_4(%arg0: i32) -> (i32, i32) {
    %c0_i32 = arith.constant 0 : i32
    %c0_i32_0 = arith.constant 0 : i32
    %c0_i32_1 = arith.constant 0 : i32
    return %c0_i32, %c0_i32_0 : i32, i32
  }
  func.func @transform_5(%arg0: i32) -> (i32, i32) {
    %c0_i32 = arith.constant 0 : i32
    %c0_i32_0 = arith.constant 0 : i32
    %c0_i32_1 = arith.constant 0 : i32
    return %c0_i32, %c0_i32_0 : i32, i32
  }
  func.func @transform_6(%arg0: i32) -> (i32, i32) {
    %c0_i32 = arith.constant 0 : i32
    %c0_i32_0 = arith.constant 0 : i32
    %c0_i32_1 = arith.constant 0 : i32
    return %c0_i32, %c0_i32_0 : i32, i32
  }
  func.func @transform_7(%arg0: i32) -> (i32, i32) {
    %c0_i32 = arith.constant 0 : i32
    %c0_i32_0 = arith.constant 0 : i32
    return %arg0, %c0_i32 : i32, i32
  }
}

</mosaic_0001>

<llo_original>
// kernel: tpu_custom_call.1
$region0: #{tpu_custom_call.1}
  #allocation0 [shape = 'u32[]', space=smem, size = 0x4, offset = 0x4, fixed_abs, tag = 'smem constant byte address 0x4 - core index']
  #allocation1 [shape = 'u32[144,128]{1,0:T(1,128)}', space=vmem, size = 0x12000, scoped, tag = 'internal scratch']
  %s0 = inlined_call_operand.vmem [shape: f32[16,6], index: 0, kind: input, shape index: {}]
  %s1 = inlined_call_operand.vmem [shape: f32[6,128], index: 1, kind: input, shape index: {}]
  %s2 = inlined_call_operand.vmem [shape: f32[1,128], index: 2, kind: input, shape index: {}]
  %s3 = inlined_call_operand.hbm [shape: f32[128,128], index: 3, kind: input, shape index: {}]
  %s4 = inlined_call_operand.vmem [shape: f32[1,128], index: 4, kind: input, shape index: {}]
  %s5 = inlined_call_operand.hbm [shape: f32[128,128], index: 5, kind: input, shape index: {}]
  %s6 = inlined_call_operand.vmem [shape: f32[1,128], index: 6, kind: input, shape index: {}]
  %s7 = inlined_call_operand.hbm [shape: f32[16,128], index: 7, kind: output, shape index: {}]
  %s8 = sld [smem:[#allocation0]]
  $region46: #{tpu_custom_call.1} parent=0
    _
  %s10 = ssub.s32 1, %s8
  %s11 = scalar_select 0, %s10, %s8
  $region1: #{tpu_custom_call.1} parent=0
    #allocation2 [shape = 'u8[65536]{0}', space=vmem, size = 0x10000, scoped, tag = 'input window, operand 3, single buffered']
    #allocation3 [shape = 's32[1]{0}', space=sflag, size = 0x4, scoped, tag = 'scoped memory for tpu_custom_call.1']
    #allocation4 [shape = 's32[1]{0}', space=sflag, size = 0x4, scoped, tag = 'scoped memory for tpu_custom_call.1']
    #allocation5 [shape = 'u8[65536]{0}', space=vmem, size = 0x10000, scoped, tag = 'input window, operand 5, single buffered']
    #allocation6 [shape = 's32[1]{0}', space=sflag, size = 0x4, scoped, tag = 'scoped memory for tpu_custom_call.1']
    #allocation7 [shape = 'u8[8192]{0}', space=vmem, size = 0x2000, scoped, tag = 'output window, operand 0, single buffered']
    %12 = vsyncpa [#allocation3], 0
    %13 = vsyncpa [#allocation6], 0
    %14 = vsyncpa [#allocation4], 0
    // Predicated region
    $region2: #{tpu_custom_call.1} parent=1 // pred_check
      _
    $region3: #{tpu_custom_call.1} parent=1 // pred_check_branch
      %16 = sbr.rel (0) target = $region5
    $region4: #{tpu_custom_call.1} parent=1 // pred_region
      _
    $region5: #{tpu_custom_call.1} parent=1 // pred_fallthru
      _
    // Predicated region
    $region6: #{tpu_custom_call.1} parent=1 // pred_check
      _
    $region7: #{tpu_custom_call.1} parent=1 // pred_check_branch
      %18 = sbr.rel (0) target = $region9
    $region8: #{tpu_custom_call.1} parent=1 // pred_region
      _
    $region9: #{tpu_custom_call.1} parent=1 // pred_fallthru
      _
    // Predicated region
    $region10: #{tpu_custom_call.1} parent=1 // pred_check
      _
    $region11: #{tpu_custom_call.1} parent=1 // pred_check_branch
      %20 = sbr.rel (0) target = $region13
    $region12: #{tpu_custom_call.1} parent=1 // pred_region
      _
    $region13: #{tpu_custom_call.1} parent=1 // pred_fallthru
      _
    // Predicated region
    $region14: #{tpu_custom_call.1} parent=1 // pred_check
      _
    $region15: #{tpu_custom_call.1} parent=1 // pred_check_branch
      %22 = sbr.rel (0) target = $region17
    $region16: #{tpu_custom_call.1} parent=1 // pred_region
      %s24 = ssub.s32 2048, 2048
      %25 = vsyncadd [#allocation3], %s24
      %s26 = sshll.u32 [#allocation2], 4
      %s27 = int_to_ptr.vmem [resolvable:$true] %s26
      %32 = dma.hbm_to_vmem [thread:$0]  %s3, 2048, %s27, [#allocation3], 128, 128, 8
    $region17: #{tpu_custom_call.1} parent=1 // pred_fallthru
      _
    // Predicated region
    $region18: #{tpu_custom_call.1} parent=1 // pred_check
      _
    $region19: #{tpu_custom_call.1} parent=1 // pred_check_branch
      %34 = sbr.rel (0) target = $region21
    $region20: #{tpu_custom_call.1} parent=1 // pred_region
      _
    $region21: #{tpu_custom_call.1} parent=1 // pred_fallthru
      _
    // Predicated region
    $region22: #{tpu_custom_call.1} parent=1 // pred_check
      _
    $region23: #{tpu_custom_call.1} parent=1 // pred_check_branch
      %36 = sbr.rel (0) target = $region25
    $region24: #{tpu_custom_call.1} parent=1 // pred_region
      %s38 = ssub.s32 2048, 2048
      %39 = vsyncadd [#allocation6], %s38
      %s40 = sshll.u32 [#allocation5], 4
      %s41 = int_to_ptr.vmem [resolvable:$true] %s40
      %46 = dma.hbm_to_vmem [thread:$0]  %s5, 2048, %s41, [#allocation6], 128, 128, 8
    $region25: #{tpu_custom_call.1} parent=1 // pred_fallthru
      _
    // Predicated region
    $region26: #{tpu_custom_call.1} parent=1 // pred_check
      _
    $region27: #{tpu_custom_call.1} parent=1 // pred_check_branch
      %48 = sbr.rel (0) target = $region29
    $region28: #{tpu_custom_call.1} parent=1 // pred_region
      _
    $region29: #{tpu_custom_call.1} parent=1 // pred_fallthru
      _
    // Predicated region
    $region30: #{tpu_custom_call.1} parent=1 // pred_check
      _
    $region31: #{tpu_custom_call.1} parent=1 // pred_check_branch
      %50 = sbr.rel (0) target = $region33
    $region32: #{tpu_custom_call.1} parent=1 // pred_region
      %51 = dma.done [#allocation3], 2048
    $region33: #{tpu_custom_call.1} parent=1 // pred_fallthru
      _
    // Predicated region
    $region34: #{tpu_custom_call.1} parent=1 // pred_check
      _
    $region35: #{tpu_custom_call.1} parent=1 // pred_check_branch
      %53 = sbr.rel (0) target = $region37
    $region36: #{tpu_custom_call.1} parent=1 // pred_region
      %54 = dma.done [#allocation6], 2048
    $region37: #{tpu_custom_call.1} parent=1 // pred_fallthru
      _
    %v55 = vld [vmem:[%s0] sm:$0xff]
    %v56 = vld [vmem:[%s0 + $0x8] sm:$0xff]
    %v57 = vld [vmem:[%s1] sm:$0x3f]
    %v58 = vld [vmem:[%s2] sm:$0x1]
    %v60 = vlaneseq
    %v61 = vshrl.u32 %v60, 7
    %v62 = vsub.s32 0, %v61
    %v63 = vrot.slane %v58, %v62
    %vm65 = vcmask 48128
    %v67 = vsel %vm65, %v55, 0
    %v70 = vsel %vm65, %v56, 0
    %vm72 = vcmask 1045504
    %v74 = vsel %vm72, %v57, 0
    %76 = vmatprep.subr.mxu0 0.0
    %77 = vmatpush1.msra.mxu0 0.0
    %78 = vmatprep.subr.mxu0 0.0
    %79 = vmatpush1.msra.mxu0 0.0
    %80 = vmatprep.subr.mxu0 0.0
    %81 = vmatpush1.msra.mxu0 0.0
    %82 = vmatprep.subr.mxu0 0.0
    %83 = vmatpush1.msra.mxu0 0.0
    %84 = vmatprep.subr.mxu0 0.0
    %85 = vmatpush1.msra.mxu0 0.0
    %86 = vmatprep.subr.mxu0 0.0
    %87 = vmatpush1.msra.mxu0 0.0
    %88 = vmatprep.subr.mxu0 0.0
    %89 = vmatpush1.msra.mxu0 0.0
    %90 = vmatprep.subr.mxu0 0.0
    %91 = vmatpush1.msra.mxu0 0.0
    %92 = vmatprep.subr.mxu0 0.0
    %93 = vmatpush1.msra.mxu0 0.0
    %94 = vmatprep.subr.mxu0 0.0
    %95 = vmatpush1.msra.mxu0 0.0
    %96 = vmatprep.subr.mxu0 0.0
    %97 = vmatpush1.msra.mxu0 0.0
    %98 = vmatprep.subr.mxu0 0.0
    %99 = vmatpush1.msra.mxu0 0.0
    %100 = vmatprep.subr.mxu0 0.0
    %101 = vmatpush1.msra.mxu0 0.0
    %102 = vmatprep.subr.mxu0 0.0
    %103 = vmatpush1.msra.mxu0 0.0
    %104 = vmatprep.subr.mxu0 0.0
    %105 = vmatpush1.msra.mxu0 0.0
    %106 = vmatprep.subr.mxu0 0.0
    %107 = vmatpush1.msra.mxu0 %v74
    %108 = vmatprep.subr.mxu0 0.0
    %109 = vmatpush2.msra.mxu0 0.0
    %110 = vmatprep.subr.mxu0 0.0
    %111 = vmatpush2.msra.mxu0 0.0
    %112 = vmatprep.subr.mxu0 0.0
    %113 = vmatpush2.msra.mxu0 0.0
    %114 = vmatprep.subr.mxu0 0.0
    %115 = vmatpush2.msra.mxu0 0.0
    %116 = vmatprep.subr.mxu0 0.0
    %117 = vmatpush2.msra.mxu0 0.0
    %118 = vmatprep.subr.mxu0 0.0
    %119 = vmatpush2.msra.mxu0 0.0
    %120 = vmatprep.subr.mxu0 0.0
    %121 = vmatpush2.msra.mxu0 0.0
    %122 = vmatprep.subr.mxu0 0.0
    %123 = vmatpush2.msra.mxu0 0.0
    %124 = vmatprep.subr.mxu0 0.0
    %125 = vmatpush2.msra.mxu0 0.0
    %126 = vmatprep.subr.mxu0 0.0
    %127 = vmatpush2.msra.mxu0 0.0
    %128 = vmatprep.subr.mxu0 0.0
    %129 = vmatpush2.msra.mxu0 0.0
    %130 = vmatprep.subr.mxu0 0.0
    %131 = vmatpush2.msra.mxu0 0.0
    %132 = vmatprep.subr.mxu0 0.0
    %133 = vmatpush2.msra.mxu0 0.0
    %134 = vmatprep.subr.mxu0 0.0
    %135 = vmatpush2.msra.mxu0 0.0
    %136 = vmatprep.subr.mxu0 0.0
    %137 = vmatpush2.msra.mxu0 0.0
    %138 = vmatprep.subr.mxu0 0.0
    %139 = vmatpush2.msra.mxu0 0.0
    %140 = vmatprep.mubr.f32.mxu0 0.0
    %141 = vmatmul.mubr.f32.gmra.mxu0 %v67
    %v142 = vpop.f32.mrf.mxu0
    %v143 = vadd.f32 %v63, %v142
    %v144 = vpop.f32.mrf.mxu0
    %145 = vmatprep.mubr.f32.mxu0 0.0
    %146 = vmatmul.mubr.f32.gmra.mxu0 %v70
    %v147 = vpop.f32.mrf.mxu0
    %v148 = vadd.f32 %v63, %v147
    %v149 = vpop.f32.mrf.mxu0
    %150 = vdwg.mxu0
    %v151 = vmax.f32 %v143, 0.0
    %v152 = vmax.f32 %v148, 0.0
    %v153 = vld [vmem:[#allocation2] sm:$0xff]
    %v154 = vld [vmem:[#allocation2 + $0x8] sm:$0xff]
    %v155 = vld [vmem:[#allocation2 + $0x10] sm:$0xff]
    %v156 = vld [vmem:[#allocation2 + $0x18] sm:$0xff]
    %v157 = vld [vmem:[#allocation2 + $0x20] sm:$0xff]
    %v158 = vld [vmem:[#allocation2 + $0x28] sm:$0xff]
    %v159 = vld [vmem:[#allocation2 + $0x30] sm:$0xff]
    %v160 = vld [vmem:[#allocation2 + $0x38] sm:$0xff]
    %v161 = vld [vmem:[#allocation2 + $0x40] sm:$0xff]
    %v162 = vld [vmem:[#allocation2 + $0x48] sm:$0xff]
    %v163 = vld [vmem:[#allocation2 + $0x50] sm:$0xff]
    %v164 = vld [vmem:[#allocation2 + $0x58] sm:$0xff]
    %v165 = vld [vmem:[#allocation2 + $0x60] sm:$0xff]
    %v166 = vld [vmem:[#allocation2 + $0x68] sm:$0xff]
    %v167 = vld [vmem:[#allocation2 + $0x70] sm:$0xff]
    %v168 = vld [vmem:[#allocation2 + $0x78] sm:$0xff]
    %v169 = vld [vmem:[%s4] sm:$0x1]
    %v171 = vlaneseq
    %v172 = vshrl.u32 %v171, 7
    %v173 = vsub.s32 0, %v172
    %v174 = vrot.slane %v169, %v173
    %176 = vmatprep.subr.mxu0 0.0
    %177 = vmatpush1.msra.mxu0 %v168
    %178 = vmatprep.subr.mxu0 0.0
    %179 = vmatpush1.msra.mxu0 %v167
    %180 = vmatprep.subr.mxu0 0.0
    %181 = vmatpush1.msra.mxu0 %v166
    %182 = vmatprep.subr.mxu0 0.0
    %183 = vmatpush1.msra.mxu0 %v165
    %184 = vmatprep.subr.mxu0 0.0
    %185 = vmatpush1.msra.mxu0 %v164
    %186 = vmatprep.subr.mxu0 0.0
    %187 = vmatpush1.msra.mxu0 %v163
    %188 = vmatprep.subr.mxu0 0.0
    %189 = vmatpush1.msra.mxu0 %v162
    %190 = vmatprep.subr.mxu0 0.0
    %191 = vmatpush1.msra.mxu0 %v161
    %192 = vmatprep.subr.mxu0 0.0
    %193 = vmatpush1.msra.mxu0 %v160
    %194 = vmatprep.subr.mxu0 0.0
    %195 = vmatpush1.msra.mxu0 %v159
    %196 = vmatprep.subr.mxu0 0.0
    %197 = vmatpush1.msra.mxu0 %v158
    %198 = vmatprep.subr.mxu0 0.0
    %199 = vmatpush1.msra.mxu0 %v157
    %200 = vmatprep.subr.mxu0 0.0
    %201 = vmatpush1.msra.mxu0 %v156
    %202 = vmatprep.subr.mxu0 0.0
    %203 = vmatpush1.msra.mxu0 %v155
    %204 = vmatprep.subr.mxu0 0.0
    %205 = vmatpush1.msra.mxu0 %v154
    %206 = vmatprep.subr.mxu0 0.0
    %207 = vmatpush1.msra.mxu0 %v153
    %208 = vmatprep.subr.mxu0 0.0
    %209 = vmatpush2.msra.mxu0 0.0
    %210 = vmatprep.subr.mxu0 0.0
    %211 = vmatpush2.msra.mxu0 0.0
    %212 = vmatprep.subr.mxu0 0.0
    %213 = vmatpush2.msra.mxu0 0.0
    %214 = vmatprep.subr.mxu0 0.0
    %215 = vmatpush2.msra.mxu0 0.0
    %216 = vmatprep.subr.mxu0 0.0
    %217 = vmatpush2.msra.mxu0 0.0
    %218 = vmatprep.subr.mxu0 0.0
    %219 = vmatpush2.msra.mxu0 0.0
    %220 = vmatprep.subr.mxu0 0.0
    %221 = vmatpush2.msra.mxu0 0.0
    %222 = vmatprep.subr.mxu0 0.0
    %223 = vmatpush2.msra.mxu0 0.0
    %224 = vmatprep.subr.mxu0 0.0
    %225 = vmatpush2.msra.mxu0 0.0
    %226 = vmatprep.subr.mxu0 0.0
    %227 = vmatpush2.msra.mxu0 0.0
    %228 = vmatprep.subr.mxu0 0.0
    %229 = vmatpush2.msra.mxu0 0.0
    %230 = vmatprep.subr.mxu0 0.0
    %231 = vmatpush2.msra.mxu0 0.0
    %232 = vmatprep.subr.mxu0 0.0
    %233 = vmatpush2.msra.mxu0 0.0
    %234 = vmatprep.subr.mxu0 0.0
    %235 = vmatpush2.msra.mxu0 0.0
    %236 = vmatprep.subr.mxu0 0.0
    %237 = vmatpush2.msra.mxu0 0.0
    %238 = vmatprep.subr.mxu0 0.0
    %239 = vmatpush2.msra.mxu0 0.0
    %240 = vmatprep.mubr.f32.mxu0 0.0
    %241 = vmatmul.mubr.f32.gmra.mxu0 %v151
    %v242 = vpop.f32.mrf.mxu0
    %v243 = vadd.f32 %v174, %v242
    %v244 = vpop.f32.mrf.mxu0
    %245 = vmatprep.mubr.f32.mxu0 0.0
    %246 = vmatmul.mubr.f32.gmra.mxu0 %v152
    %v247 = vpop.f32.mrf.mxu0
    %v248 = vadd.f32 %v174, %v247
    %v249 = vpop.f32.mrf.mxu0
    %250 = vdwg.mxu0
    %v251 = vmax.f32 %v243, 0.0
    %v252 = vmax.f32 %v248, 0.0
    %v253 = vld [vmem:[#allocation5] sm:$0xff]
    %v254 = vld [vmem:[#allocation5 + $0x8] sm:$0xff]
    %v255 = vld [vmem:[#allocation5 + $0x10] sm:$0xff]
    %v256 = vld [vmem:[#allocation5 + $0x18] sm:$0xff]
    %v257 = vld [vmem:[#allocation5 + $0x20] sm:$0xff]
    %v258 = vld [vmem:[#allocation5 + $0x28] sm:$0xff]
    %v259 = vld [vmem:[#allocation5 + $0x30] sm:$0xff]
    %v260 = vld [vmem:[#allocation5 + $0x38] sm:$0xff]
    %v261 = vld [vmem:[#allocation5 + $0x40] sm:$0xff]
    %v262 = vld [vmem:[#allocation5 + $0x48] sm:$0xff]
    %v263 = vld [vmem:[#allocation5 + $0x50] sm:$0xff]
    %v264 = vld [vmem:[#allocation5 + $0x58] sm:$0xff]
    %v265 = vld [vmem:[#allocation5 + $0x60] sm:$0xff]
    %v266 = vld [vmem:[#allocation5 + $0x68] sm:$0xff]
    %v267 = vld [vmem:[#allocation5 + $0x70] sm:$0xff]
    %v268 = vld [vmem:[#allocation5 + $0x78] sm:$0xff]
    %v269 = vld [vmem:[%s6] sm:$0x1]
    %v271 = vlaneseq
    %v272 = vshrl.u32 %v271, 7
    %v273 = vsub.s32 0, %v272
    %v274 = vrot.slane %v269, %v273
    %276 = vmatprep.subr.mxu0 0.0
    %277 = vmatpush1.msra.mxu0 %v268
    %278 = vmatprep.subr.mxu0 0.0
    %279 = vmatpush1.msra.mxu0 %v267
    %280 = vmatprep.subr.mxu0 0.0
    %281 = vmatpush1.msra.mxu0 %v266
    %282 = vmatprep.subr.mxu0 0.0
    %283 = vmatpush1.msra.mxu0 %v265
    %284 = vmatprep.subr.mxu0 0.0
    %285 = vmatpush1.msra.mxu0 %v264
    %286 = vmatprep.subr.mxu0 0.0
    %287 = vmatpush1.msra.mxu0 %v263
    %288 = vmatprep.subr.mxu0 0.0
    %289 = vmatpush1.msra.mxu0 %v262
    %290 = vmatprep.subr.mxu0 0.0
    %291 = vmatpush1.msra.mxu0 %v261
    %292 = vmatprep.subr.mxu0 0.0
    %293 = vmatpush1.msra.mxu0 %v260
    %294 = vmatprep.subr.mxu0 0.0
    %295 = vmatpush1.msra.mxu0 %v259
    %296 = vmatprep.subr.mxu0 0.0
    %297 = vmatpush1.msra.mxu0 %v258
    %298 = vmatprep.subr.mxu0 0.0
    %299 = vmatpush1.msra.mxu0 %v257
    %300 = vmatprep.subr.mxu0 0.0
    %301 = vmatpush1.msra.mxu0 %v256
    %302 = vmatprep.subr.mxu0 0.0
    %303 = vmatpush1.msra.mxu0 %v255
    %304 = vmatprep.subr.mxu0 0.0
    %305 = vmatpush1.msra.mxu0 %v254
    %306 = vmatprep.subr.mxu0 0.0
    %307 = vmatpush1.msra.mxu0 %v253
    %308 = vmatprep.subr.mxu0 0.0
    %309 = vmatpush2.msra.mxu0 0.0
    %310 = vmatprep.subr.mxu0 0.0
    %311 = vmatpush2.msra.mxu0 0.0
    %312 = vmatprep.subr.mxu0 0.0
    %313 = vmatpush2.msra.mxu0 0.0
    %314 = vmatprep.subr.mxu0 0.0
    %315 = vmatpush2.msra.mxu0 0.0
    %316 = vmatprep.subr.mxu0 0.0
    %317 = vmatpush2.msra.mxu0 0.0
    %318 = vmatprep.subr.mxu0 0.0
    %319 = vmatpush2.msra.mxu0 0.0
    %320 = vmatprep.subr.mxu0 0.0
    %321 = vmatpush2.msra.mxu0 0.0
    %322 = vmatprep.subr.mxu0 0.0
    %323 = vmatpush2.msra.mxu0 0.0
    %324 = vmatprep.subr.mxu0 0.0
    %325 = vmatpush2.msra.mxu0 0.0
    %326 = vmatprep.subr.mxu0 0.0
    %327 = vmatpush2.msra.mxu0 0.0
    %328 = vmatprep.subr.mxu0 0.0
    %329 = vmatpush2.msra.mxu0 0.0
    %330 = vmatprep.subr.mxu0 0.0
    %331 = vmatpush2.msra.mxu0 0.0
    %332 = vmatprep.subr.mxu0 0.0
    %333 = vmatpush2.msra.mxu0 0.0
    %334 = vmatprep.subr.mxu0 0.0
    %335 = vmatpush2.msra.mxu0 0.0
    %336 = vmatprep.subr.mxu0 0.0
    %337 = vmatpush2.msra.mxu0 0.0
    %338 = vmatprep.subr.mxu0 0.0
    %339 = vmatpush2.msra.mxu0 0.0
    %340 = vmatprep.mubr.f32.mxu0 0.0
    %341 = vmatmul.mubr.f32.gmra.mxu0 %v251
    %v342 = vpop.f32.mrf.mxu0
    %v343 = vadd.f32 %v274, %v342
    %v344 = vpop.f32.mrf.mxu0
    %345 = vmatprep.mubr.f32.mxu0 0.0
    %346 = vmatmul.mubr.f32.gmra.mxu0 %v252
    %v347 = vpop.f32.mrf.mxu0
    %v348 = vadd.f32 %v274, %v347
    %v349 = vpop.f32.mrf.mxu0
    %350 = vdwg.mxu0
    %351 = vst [vmem:[#allocation7] sm:$0xff] %v343
    %352 = vst [vmem:[#allocation7 + $0x8] sm:$0xff] %v348
    // Predicated region
    $region38: #{tpu_custom_call.1} parent=1 // pred_check
      _
    $region39: #{tpu_custom_call.1} parent=1 // pred_check_branch
      %354 = sbr.rel (0) target = $region41
    $region40: #{tpu_custom_call.1} parent=1 // pred_region
      %s356 = ssub.s32 256, 256
      %357 = vsyncadd [#allocation4], %s356
      %s358 = sshll.u32 [#allocation7], 4
      %s359 = int_to_ptr.vmem [resolvable:$true] %s358
      %364 = dma.vmem_to_hbm [thread:$0]  %s359, 256, %s7, [#allocation4], 128, 128, 8
    $region41: #{tpu_custom_call.1} parent=1 // pred_fallthru
      _
    // Predicated region
    $region42: #{tpu_custom_call.1} parent=1 // pred_check
      _
    $region43: #{tpu_custom_call.1} parent=1 // pred_check_branch
      %366 = sbr.rel (0) target = $region45
    $region44: #{tpu_custom_call.1} parent=1 // pred_region
      %367 = dma.done [#allocation4], 256
    $region45: #{tpu_custom_call.1} parent=1 // pred_fallthru
      _
    %368 = vsyncpa [#allocation3], 1
    %369 = vsyncpa [#allocation6], 1
    %370 = vsyncpa [#allocation4], 1

</llo_original>
